<compile_context>
chip_gen: v6e
topology: v6e:2x2x1
jax: 0.10.0
libtpu: 0.0.40
codegen_flags: <defaults>
</compile_context>

<pallas_src>
import functools

import jax
import jax.numpy as jnp
import numpy as np
from jax import lax
from jax.experimental import pallas as pl
from jax.experimental.pallas import tpu as pltpu

# Allowed taps of a 3x3 mask-'B' PixelCNN kernel (padding=1):
#   row 0: all columns; row 1: columns 0,1; row 2: none.
_TAPS = ((0, 0), (0, 1), (0, 2), (1, 0), (1, 1))


def _make_tap_masks(H, W, HWp):
    """(5, HWp) 0/1 validity masks in the 128-padded flat-spatial layout."""
    masks = np.zeros((len(_TAPS), HWp), np.float32)
    rows = np.arange(H)[:, None]
    cols = np.arange(W)[None, :]
    for t, (kh, kw) in enumerate(_TAPS):
        dr, dc = kh - 1, kw - 1                           # padding = 1
        valid = ((rows + dr >= 0) & (rows + dr < H) &
                 (cols + dc >= 0) & (cols + dc < W))
        masks[t, :H * W] = valid.astype(np.float32).reshape(H * W)
    return masks                                          # pad lanes stay 0


def _residual_block_kernel(W, x_ref, w1_ref, w2_ref, mask_ref, o_ref, stk_ref):
    # x_ref    : (C, N)      lane-dense activations (N = chunk_b * HWp)
    # w*_ref   : (C, 5C+1)   fused per-tap channel-mix weights + bias column
    # mask_ref : (5, N)      per-tap border/seam validity masks (0/1)
    # stk_ref  : (5C+1, N)   f32 VMEM scratch holding the stacked taps
    C, N = x_ref.shape
    x = x_ref[...].astype(jnp.float32)

    # Constant-ones row -> bias is folded into the fused matmul (K = 5C+1).
    # Written unconditionally: safe even when grid steps land on different
    # TensorCores (no reliance on scratch state from another step).
    stk_ref[5 * C:5 * C + 1, :] = jnp.ones((1, N), jnp.float32)

    def fused_masked_conv(inp, w_ref):
        # Taps as rolls of the flattened row-major spatial axis (row stride W).
        # up-left / left are derived via cheap +1 lane rolls; all roll
        # amounts are non-negative.  Wrapped lanes are zeroed by the masks.
        up = pltpu.roll(inp, W, axis=1)                   # (r-1, c)
        taps = (
            pltpu.roll(up, 1, axis=1),                    # (0,0) up-left
            up,                                           # (0,1) up
            pltpu.roll(inp, W - 1, axis=1),               # (0,2) up-right
            pltpu.roll(inp, 1, axis=1),                   # (1,0) left
            inp,                                          # (1,1) center
        )
        for t, tap in enumerate(taps):
            if t < 4:                                     # center always valid
                tap = tap * mask_ref[t:t + 1, :]
            stk_ref[t * C:(t + 1) * C, :] = tap
        # Single MXU matmul per conv; accumulation stays in the MXU result
        # path (no live f32 accumulator across taps, no VPU partial sums).
        return jnp.dot(w_ref[...], stk_ref[...],
                       preferred_element_type=jnp.float32)

    h = jnp.maximum(fused_masked_conv(x, w1_ref), 0.0)    # conv1 + ReLU
    y = fused_masked_conv(h, w2_ref)                      # conv2
    o_ref[...] = (x + y).astype(o_ref.dtype)              # residual add


def residual_block(x_nchw, w1_oihw, b1, w2_oihw, b2):
    """ResidualBlock forward.  x: (B,C,H,W); w: (Cout,Cin,3,3); b: (C,)."""
    B, C, H, W = x_nchw.shape
    HW = H * W
    HWp = -(-HW // 128) * 128          # lane-align each image's flat slab

    # Batch folded into the lane (matmul-N) axis; at least 2 grid steps when
    # B >= 2 so both v7x TensorCores get work, and the per-step lane width is
    # capped so the f32 working set fits VMEM comfortably.
    # TODO(synk): if a single image's HWp ever exceeds the cap, tiling along
    # HW needs a W+1 halo (the rolls read across the flattened-row seam).
    MAX_CHUNK_LANES = 16 * 1024
    chunk_b = B // 2 if (B >= 2 and B % 2 == 0) else 1
    chunk_b = max(1, min(chunk_b, MAX_CHUNK_LANES // HWp))
    while B % chunk_b:
        chunk_b -= 1
    n_chunks = B // chunk_b
    chunk_n = chunk_b * HWp

    # Lane-dense (C, B*HWp) slab (layout plumbing only, done once in XLA).
    x = x_nchw.reshape(B, C, HW)
    if HWp != HW:
        x = jnp.pad(x, ((0, 0), (0, 0), (0, HWp - HW)))
    x = x.transpose(1, 0, 2).reshape(C, B * HWp)

    # Gathering only the 5 allowed taps implements the mask-'B' weight
    # masking; the appended column folds the bias into the matmul.
    def fuse(w_oihw, b):
        cols = [w_oihw[:, :, kh, kw] for kh, kw in _TAPS]     # 5 x (Cout, Cin)
        cols.append(b.reshape(C, 1))
        return jnp.concatenate(cols, axis=1)                  # (C, 5C+1)

    w1 = fuse(w1_oihw, b1)
    w2 = fuse(w2_oihw, b2)
    masks = jnp.asarray(np.tile(_make_tap_masks(H, W, HWp), (1, chunk_b)))

    def const_spec(shape):
        return pl.BlockSpec(shape, lambda i: (0,) * len(shape))

    out = pl.pallas_call(
        functools.partial(_residual_block_kernel, W),
        out_shape=jax.ShapeDtypeStruct((C, B * HWp), x_nchw.dtype),
        grid=(n_chunks,),
        in_specs=[
            pl.BlockSpec((C, chunk_n), lambda i: (0, i)),     # activations
            const_spec((C, 5 * C + 1)),                       # fused w1 (+b1)
            const_spec((C, 5 * C + 1)),                       # fused w2 (+b2)
            const_spec((len(_TAPS), chunk_n)),                # border masks
        ],
        out_specs=pl.BlockSpec((C, chunk_n), lambda i: (0, i)),
        scratch_shapes=[pltpu.VMEM((5 * C + 1, chunk_n), jnp.float32)],
        compiler_params=pltpu.CompilerParams(
            dimension_semantics=("parallel",)),
    )(x, w1, w2, masks)

    out = out.reshape(C, B, HWp)[:, :, :HW].transpose(1, 0, 2)
    return out.reshape(B, C, H, W)


if __name__ == "__main__":
    key = jax.random.PRNGKey(0)
    B, C, H, W = 2, 4, 16, 16
    kx, k1, kb1, k2, kb2 = jax.random.split(key, 5)

    # PyTorch-convention shapes: input NCHW, weight (out, in, kH, kW).
    x = jax.random.normal(kx, (B, C, H, W), jnp.float32)
    w1 = jax.random.normal(k1, (C, C, 3, 3), jnp.float32) * 0.1
    w2 = jax.random.normal(k2, (C, C, 3, 3), jnp.float32) * 0.1
    b1 = jax.random.normal(kb1, (C,), jnp.float32) * 0.1
    b2 = jax.random.normal(kb2, (C,), jnp.float32) * 0.1

    out = jax.block_until_ready(residual_block(x, w1, b1, w2, b2))

    # Reference: XLA convs with explicitly masked (type 'B') weights.
    mask = np.ones((C, C, 3, 3), np.float32)
    mask[:, :, 1, 2:] = 0.0
    mask[:, :, 2:, :] = 0.0
    dn = ("NCHW", "OIHW", "NCHW")
    h_ref = lax.conv_general_dilated(x, w1 * mask, (1, 1), "SAME",
                                     dimension_numbers=dn) + b1[None, :, None, None]
    h_ref = jnp.maximum(h_ref, 0.0)
    ref = x + (lax.conv_general_dilated(h_ref, w2 * mask, (1, 1), "SAME",
                                        dimension_numbers=dn) + b2[None, :, None, None])
    np.testing.assert_allclose(np.asarray(out), np.asarray(ref),
                               atol=1e-4, rtol=1e-4)

    print("KERNEL_OK")
</pallas_src>

<mosaic_0001>
module attributes {stable_mosaic.version = 11 : i64} {
  func.func @_residual_block_kernel(%arg0: i32, %arg1: memref<4x256xf32, #tpu.memory_space<vmem>>, %arg2: memref<4x21xf32, #tpu.memory_space<vmem>>, %arg3: memref<4x21xf32, #tpu.memory_space<vmem>>, %arg4: memref<5x256xf32, #tpu.memory_space<vmem>>, %arg5: memref<4x256xf32, #tpu.memory_space<vmem>>, %arg6: memref<21x256xf32, #tpu.memory_space<vmem>>) attributes {dimension_semantics = [#tpu.dimension_semantics<parallel>], iteration_bounds = array<i64: 2>, scalar_prefetch = 0 : i64, scratch_operands = 1 : i64, tpu.core_type = #tpu.core_type<tc>, window_params = [{transform_indices = @transform_0, window_bounds = array<i64: 4, 256>}, {pipeline_mode = #tpu.pipeline_mode<synchronous>, transform_indices = @transform_1, window_bounds = array<i64: 4, 21>}, {pipeline_mode = #tpu.pipeline_mode<synchronous>, transform_indices = @transform_2, window_bounds = array<i64: 4, 21>}, {pipeline_mode = #tpu.pipeline_mode<synchronous>, transform_indices = @transform_3, window_bounds = array<i64: 5, 256>}, {transform_indices = @transform_4, window_bounds = array<i64: 4, 256>}]} {
    %c0 = arith.constant 0 : index
    %c0_0 = arith.constant 0 : index
    %0 = vector.load %arg1[%c0, %c0_0] : memref<4x256xf32, #tpu.memory_space<vmem>>, vector<4x256xf32>
    %cst = arith.constant 1.000000e+00 : f32
    %1 = vector.broadcast %cst : f32 to vector<1x256xf32>
    %c20 = arith.constant 20 : index
    %c0_1 = arith.constant 0 : index
    %2 = vector.load %arg6[%c20, %c0_1] : memref<21x256xf32, #tpu.memory_space<vmem>>, vector<1x256xf32>
    tpu.vector_store %arg6[%c20, %c0_1], %1 {strides = array<i32>} : memref<21x256xf32, #tpu.memory_space<vmem>>, vector<1x256xf32>,
    %c16_i32 = arith.constant 16 : i32
    %3 = tpu.dynamic_rotate %0 by %c16_i32 dim 1 : vector<4x256xf32>, i32 -> vector<4x256xf32>
    %c1_i32 = arith.constant 1 : i32
    %4 = tpu.dynamic_rotate %3 by %c1_i32 dim 1 : vector<4x256xf32>, i32 -> vector<4x256xf32>
    %c15_i32 = arith.constant 15 : i32
    %5 = tpu.dynamic_rotate %0 by %c15_i32 dim 1 : vector<4x256xf32>, i32 -> vector<4x256xf32>
    %c1_i32_2 = arith.constant 1 : i32
    %6 = tpu.dynamic_rotate %0 by %c1_i32_2 dim 1 : vector<4x256xf32>, i32 -> vector<4x256xf32>
    %c0_3 = arith.constant 0 : index
    %c0_4 = arith.constant 0 : index
    %7 = vector.load %arg4[%c0_3, %c0_4] : memref<5x256xf32, #tpu.memory_space<vmem>>, vector<1x256xf32>
    %8 = vector.broadcast %7 : vector<1x256xf32> to vector<4x256xf32>
    %9 = arith.mulf %4, %8 : vector<4x256xf32>
    %c0_5 = arith.constant 0 : index
    %c0_6 = arith.constant 0 : index
    %10 = vector.load %arg6[%c0_5, %c0_6] : memref<21x256xf32, #tpu.memory_space<vmem>>, vector<4x256xf32>
    tpu.vector_store %arg6[%c0_5, %c0_6], %9 {strides = array<i32>} : memref<21x256xf32, #tpu.memory_space<vmem>>, vector<4x256xf32>,
    %c1 = arith.constant 1 : index
    %c0_7 = arith.constant 0 : index
    %11 = vector.load %arg4[%c1, %c0_7] : memref<5x256xf32, #tpu.memory_space<vmem>>, vector<1x256xf32>
    %12 = vector.broadcast %11 : vector<1x256xf32> to vector<4x256xf32>
    %13 = arith.mulf %3, %12 : vector<4x256xf32>
    %c4 = arith.constant 4 : index
    %c0_8 = arith.constant 0 : index
    %14 = vector.load %arg6[%c4, %c0_8] : memref<21x256xf32, #tpu.memory_space<vmem>>, vector<4x256xf32>
    tpu.vector_store %arg6[%c4, %c0_8], %13 {strides = array<i32>} : memref<21x256xf32, #tpu.memory_space<vmem>>, vector<4x256xf32>,
    %c2 = arith.constant 2 : index
    %c0_9 = arith.constant 0 : index
    %15 = vector.load %arg4[%c2, %c0_9] : memref<5x256xf32, #tpu.memory_space<vmem>>, vector<1x256xf32>
    %16 = vector.broadcast %15 : vector<1x256xf32> to vector<4x256xf32>
    %17 = arith.mulf %5, %16 : vector<4x256xf32>
    %c8 = arith.constant 8 : index
    %c0_10 = arith.constant 0 : index
    %18 = vector.load %arg6[%c8, %c0_10] : memref<21x256xf32, #tpu.memory_space<vmem>>, vector<4x256xf32>
    tpu.vector_store %arg6[%c8, %c0_10], %17 {strides = array<i32>} : memref<21x256xf32, #tpu.memory_space<vmem>>, vector<4x256xf32>,
    %c3 = arith.constant 3 : index
    %c0_11 = arith.constant 0 : index
    %19 = vector.load %arg4[%c3, %c0_11] : memref<5x256xf32, #tpu.memory_space<vmem>>, vector<1x256xf32>
    %20 = vector.broadcast %19 : vector<1x256xf32> to vector<4x256xf32>
    %21 = arith.mulf %6, %20 : vector<4x256xf32>
    %c12 = arith.constant 12 : index
    %c0_12 = arith.constant 0 : index
    %22 = vector.load %arg6[%c12, %c0_12] : memref<21x256xf32, #tpu.memory_space<vmem>>, vector<4x256xf32>
    tpu.vector_store %arg6[%c12, %c0_12], %21 {strides = array<i32>} : memref<21x256xf32, #tpu.memory_space<vmem>>, vector<4x256xf32>,
    %c16 = arith.constant 16 : index
    %c0_13 = arith.constant 0 : index
    %23 = vector.load %arg6[%c16, %c0_13] : memref<21x256xf32, #tpu.memory_space<vmem>>, vector<4x256xf32>
    tpu.vector_store %arg6[%c16, %c0_13], %0 {strides = array<i32>} : memref<21x256xf32, #tpu.memory_space<vmem>>, vector<4x256xf32>,
    %c0_14 = arith.constant 0 : index
    %c0_15 = arith.constant 0 : index
    %24 = vector.load %arg2[%c0_14, %c0_15] : memref<4x21xf32, #tpu.memory_space<vmem>>, vector<4x21xf32>
    %c0_16 = arith.constant 0 : index
    %c0_17 = arith.constant 0 : index
    %25 = vector.load %arg6[%c0_16, %c0_17] : memref<21x256xf32, #tpu.memory_space<vmem>>, vector<21x256xf32>
    %cst_18 = arith.constant dense<0.000000e+00> : vector<4x256xf32>
    %26 = tpu.matmul %24, %25, %cst_18 {dimension_numbers = #tpu.dot_dimension_numbers<[1], [0], [0], [1], [0, 0, 1, 1], [], []>} : vector<4x21xf32>, vector<21x256xf32>, vector<4x256xf32> -> vector<4x256xf32>
    %cst_19 = arith.constant 0.000000e+00 : f32
    %27 = vector.broadcast %cst_19 : f32 to vector<4x256xf32>
    %28 = arith.maximumf %26, %27 : vector<4x256xf32>
    %c16_i32_20 = arith.constant 16 : i32
    %29 = tpu.dynamic_rotate %28 by %c16_i32_20 dim 1 : vector<4x256xf32>, i32 -> vector<4x256xf32>
    %c1_i32_21 = arith.constant 1 : i32
    %30 = tpu.dynamic_rotate %29 by %c1_i32_21 dim 1 : vector<4x256xf32>, i32 -> vector<4x256xf32>
    %c15_i32_22 = arith.constant 15 : i32
    %31 = tpu.dynamic_rotate %28 by %c15_i32_22 dim 1 : vector<4x256xf32>, i32 -> vector<4x256xf32>
    %c1_i32_23 = arith.constant 1 : i32
    %32 = tpu.dynamic_rotate %28 by %c1_i32_23 dim 1 : vector<4x256xf32>, i32 -> vector<4x256xf32>
    %c0_24 = arith.constant 0 : index
    %c0_25 = arith.constant 0 : index
    %33 = vector.load %arg4[%c0_24, %c0_25] : memref<5x256xf32, #tpu.memory_space<vmem>>, vector<1x256xf32>
    %34 = vector.broadcast %33 : vector<1x256xf32> to vector<4x256xf32>
    %35 = arith.mulf %30, %34 : vector<4x256xf32>
    %c0_26 = arith.constant 0 : index
    %c0_27 = arith.constant 0 : index
    %36 = vector.load %arg6[%c0_26, %c0_27] : memref<21x256xf32, #tpu.memory_space<vmem>>, vector<4x256xf32>
    tpu.vector_store %arg6[%c0_26, %c0_27], %35 {strides = array<i32>} : memref<21x256xf32, #tpu.memory_space<vmem>>, vector<4x256xf32>,
    %c1_28 = arith.constant 1 : index
    %c0_29 = arith.constant 0 : index
    %37 = vector.load %arg4[%c1_28, %c0_29] : memref<5x256xf32, #tpu.memory_space<vmem>>, vector<1x256xf32>
    %38 = vector.broadcast %37 : vector<1x256xf32> to vector<4x256xf32>
    %39 = arith.mulf %29, %38 : vector<4x256xf32>
    %c4_30 = arith.constant 4 : index
    %c0_31 = arith.constant 0 : index
    %40 = vector.load %arg6[%c4_30, %c0_31] : memref<21x256xf32, #tpu.memory_space<vmem>>, vector<4x256xf32>
    tpu.vector_store %arg6[%c4_30, %c0_31], %39 {strides = array<i32>} : memref<21x256xf32, #tpu.memory_space<vmem>>, vector<4x256xf32>,
    %c2_32 = arith.constant 2 : index
    %c0_33 = arith.constant 0 : index
    %41 = vector.load %arg4[%c2_32, %c0_33] : memref<5x256xf32, #tpu.memory_space<vmem>>, vector<1x256xf32>
    %42 = vector.broadcast %41 : vector<1x256xf32> to vector<4x256xf32>
    %43 = arith.mulf %31, %42 : vector<4x256xf32>
    %c8_34 = arith.constant 8 : index
    %c0_35 = arith.constant 0 : index
    %44 = vector.load %arg6[%c8_34, %c0_35] : memref<21x256xf32, #tpu.memory_space<vmem>>, vector<4x256xf32>
    tpu.vector_store %arg6[%c8_34, %c0_35], %43 {strides = array<i32>} : memref<21x256xf32, #tpu.memory_space<vmem>>, vector<4x256xf32>,
    %c3_36 = arith.constant 3 : index
    %c0_37 = arith.constant 0 : index
    %45 = vector.load %arg4[%c3_36, %c0_37] : memref<5x256xf32, #tpu.memory_space<vmem>>, vector<1x256xf32>
    %46 = vector.broadcast %45 : vector<1x256xf32> to vector<4x256xf32>
    %47 = arith.mulf %32, %46 : vector<4x256xf32>
    %c12_38 = arith.constant 12 : index
    %c0_39 = arith.constant 0 : index
    %48 = vector.load %arg6[%c12_38, %c0_39] : memref<21x256xf32, #tpu.memory_space<vmem>>, vector<4x256xf32>
    tpu.vector_store %arg6[%c12_38, %c0_39], %47 {strides = array<i32>} : memref<21x256xf32, #tpu.memory_space<vmem>>, vector<4x256xf32>,
    %c16_40 = arith.constant 16 : index
    %c0_41 = arith.constant 0 : index
    %49 = vector.load %arg6[%c16_40, %c0_41] : memref<21x256xf32, #tpu.memory_space<vmem>>, vector<4x256xf32>
    tpu.vector_store %arg6[%c16_40, %c0_41], %28 {strides = array<i32>} : memref<21x256xf32, #tpu.memory_space<vmem>>, vector<4x256xf32>,
    %c0_42 = arith.constant 0 : index
    %c0_43 = arith.constant 0 : index
    %50 = vector.load %arg3[%c0_42, %c0_43] : memref<4x21xf32, #tpu.memory_space<vmem>>, vector<4x21xf32>
    %c0_44 = arith.constant 0 : index
    %c0_45 = arith.constant 0 : index
    %51 = vector.load %arg6[%c0_44, %c0_45] : memref<21x256xf32, #tpu.memory_space<vmem>>, vector<21x256xf32>
    %cst_46 = arith.constant dense<0.000000e+00> : vector<4x256xf32>
    %52 = tpu.matmul %50, %51, %cst_46 {dimension_numbers = #tpu.dot_dimension_numbers<[1], [0], [0], [1], [0, 0, 1, 1], [], []>} : vector<4x21xf32>, vector<21x256xf32>, vector<4x256xf32> -> vector<4x256xf32>
    %53 = arith.addf %0, %52 : vector<4x256xf32>
    %c0_47 = arith.constant 0 : index
    %c0_48 = arith.constant 0 : index
    %54 = vector.load %arg5[%c0_47, %c0_48] : memref<4x256xf32, #tpu.memory_space<vmem>>, vector<4x256xf32>
    tpu.vector_store %arg5[%c0_47, %c0_48], %53 {strides = array<i32>} : memref<4x256xf32, #tpu.memory_space<vmem>>, vector<4x256xf32>,
    return
  }
  func.func @transform_0(%arg0: i32) -> (i32, i32) {
    %c0_i32 = arith.constant 0 : i32
    %c0_i32_0 = arith.constant 0 : i32
    return %c0_i32, %arg0 : i32, i32
  }
  func.func @transform_1(%arg0: i32) -> (i32, i32) {
    %c0_i32 = arith.constant 0 : i32
    %c0_i32_0 = arith.constant 0 : i32
    %c0_i32_1 = arith.constant 0 : i32
    return %c0_i32, %c0_i32_0 : i32, i32
  }
  func.func @transform_2(%arg0: i32) -> (i32, i32) {
    %c0_i32 = arith.constant 0 : i32
    %c0_i32_0 = arith.constant 0 : i32
    %c0_i32_1 = arith.constant 0 : i32
    return %c0_i32, %c0_i32_0 : i32, i32
  }
  func.func @transform_3(%arg0: i32) -> (i32, i32) {
    %c0_i32 = arith.constant 0 : i32
    %c0_i32_0 = arith.constant 0 : i32
    %c0_i32_1 = arith.constant 0 : i32
    return %c0_i32, %c0_i32_0 : i32, i32
  }
  func.func @transform_4(%arg0: i32) -> (i32, i32) {
    %c0_i32 = arith.constant 0 : i32
    %c0_i32_0 = arith.constant 0 : i32
    return %c0_i32, %arg0 : i32, i32
  }
}

</mosaic_0001>

<llo_original>
// kernel: tpu_custom_call.1
$region0: #{tpu_custom_call.1}
  #allocation0 [shape = 'u32[]', space=smem, size = 0x4, offset = 0x4, fixed_abs, tag = 'smem constant byte address 0x4 - core index']
  #allocation1 [shape = 'u32[144,128]{1,0:T(1,128)}', space=vmem, size = 0x12000, scoped, tag = 'internal scratch']
  #allocation2 [shape = 'f32[21,256]{1,0:T(8,128)}', space=vmem, size = 0x6000, scoped, tag = 'scratch operand']
  %s0 = inlined_call_operand.hbm [shape: f32[4,512], index: 0, kind: input, shape index: {}]
  %s1 = inlined_call_operand.hbm [shape: f32[4,21], index: 1, kind: input, shape index: {}]
  %s2 = inlined_call_operand.hbm [shape: f32[4,21], index: 2, kind: input, shape index: {}]
  %s3 = inlined_call_operand.hbm [shape: f32[5,256], index: 3, kind: input, shape index: {}]
  %s4 = inlined_call_operand.hbm [shape: f32[4,512], index: 4, kind: output, shape index: {}]
  %s5 = sld [smem:[#allocation0]]
  $region65: #{tpu_custom_call.1} parent=0
    _
  %s7 = ssub.s32 1, %s5
  %s8 = scalar_select 0, %s7, %s5
  $region1: #{tpu_custom_call.1} parent=0
    #allocation3 [shape = 'u8[8192]{0}', space=vmem, size = 0x2000, scoped, tag = 'input window, operand 0']
    #allocation4 [shape = 's32[2]{0}', space=sflag, size = 0x8, scoped, tag = 'scoped memory for tpu_custom_call.1']
    #allocation5 [shape = 's32[2]{0}', space=sflag, size = 0x8, scoped, tag = 'scoped memory for tpu_custom_call.1']
    #allocation6 [shape = 'u8[2048]{0}', space=vmem, size = 0x800, scoped, tag = 'input window, operand 1, single buffered']
    #allocation7 [shape = 's32[1]{0}', space=sflag, size = 0x4, scoped, tag = 'scoped memory for tpu_custom_call.1']
    #allocation8 [shape = 'u8[2048]{0}', space=vmem, size = 0x800, scoped, tag = 'input window, operand 2, single buffered']
    #allocation9 [shape = 'u8[8192]{0}', space=vmem, size = 0x2000, scoped, tag = 'input window, operand 3, single buffered']
    #allocation10 [shape = 's32[1]{0}', space=sflag, size = 0x4, scoped, tag = 'scoped memory for tpu_custom_call.1']
    #allocation11 [shape = 'u8[8192]{0}', space=vmem, size = 0x2000, scoped, tag = 'output window, operand 0']
    %9 = vsyncpa [#allocation4], 0
    %s10 = scalar_lea.sflag [#allocation4], 1
    %11 = vsyncpa %s10, 0
    %12 = vsyncpa [#allocation7], 0
    %13 = vsyncpa [#allocation10], 0
    %14 = vsyncpa [#allocation5], 0
    %s15 = scalar_lea.sflag [#allocation5], 1
    %16 = vsyncpa %s15, 0
    loop: start=0, step=1, limit=4
    $region2: #{tpu_custom_call.1} parent=1 // loop_pre_header
      _
    $region3: #{tpu_custom_call.1} parent=1 // loop_header
      %s18 = sphi 0, %s22
      %p19 = scmp.ge.s32.totalorder %s18, 4
      %s28 = sphi 0, %s30
      %s31 = sphi 0, %s28
      %s32 = sphi 0, %s31
      %s48 = sphi 0, %s32
      %s52 = sphi 0, %s52
      %s54 = sphi 0, %s52
      %s55 = sphi 0, %s54
      %s69 = sphi 0, %s55
      %s73 = sphi 0, %s73
      %s75 = sphi 0, %s73
      %s76 = sphi 0, %s75
      %s90 = sphi 0, %s76
      %s94 = sphi 0, %s94
      %s96 = sphi 0, %s94
      %s97 = sphi 0, %s96
      %s111 = sphi 0, %s97
      %s117 = sphi 0, %s119
      %s120 = sphi 0, %s117
      %s121 = sphi 0, %s120
      %s137 = sphi 0, %s121
    $region4: #{tpu_custom_call.1} parent=1 // loop_header_branch
      %21 = sbr.rel (%p19) target = $region8
    $region5: #{tpu_custom_call.1} parent=1 // loop_body
      %s23 = ssub.s32 %s18, 1
      %s24 = ssub.s32 %s18, 2
      %s25 = sadd.s32 %s18, 1
      %s26 = ssub.s32 %s18, %s25
      %p27 = scmp.eq.s32.totalorder %s26, 0
      %s29 = sadd.s32 %s28, 1
      %s30 = scalar_select %p27, %s28, %s29
      %p33 = pneg %p27
      %p34 = scmp.eq.s32.totalorder %s18, 1
      %p35 = por %p33, %p34
      %p36 = scmp.ne.s32.totalorder %s28, %s31
      %p37 = scmp.eq.s32.totalorder %s18, 0
      %p38 = por %p36, %p37
      %p39 = scmp.ne.s32.totalorder %s28, %s31
      %p40 = scmp.eq.s32.totalorder %s23, 1
      %p41 = por %p39, %p40
      %p42 = scmp.ne.s32.totalorder %s31, %s32
      %p43 = scmp.eq.s32.totalorder %s23, 0
      %p44 = por %p42, %p43
      %p45 = scmp.ne.s32.totalorder %s31, %s32
      %p46 = scmp.eq.s32.totalorder %s24, 1
      %p47 = por %p45, %p46
      %p49 = scmp.ne.s32.totalorder %s32, %s48
      %p50 = scmp.eq.s32.totalorder %s24, 0
      %p51 = por %p49, %p50
      %s53 = sadd.s32 %s52, 1
      %p56 = scmp.eq.s32.totalorder %s18, 1
      %p57 = scmp.ne.s32.totalorder %s52, %s54
      %p58 = scmp.eq.s32.totalorder %s18, 0
      %p59 = por %p57, %p58
      %p60 = scmp.ne.s32.totalorder %s52, %s54
      %p61 = scmp.eq.s32.totalorder %s23, 1
      %p62 = por %p60, %p61
      %p63 = scmp.ne.s32.totalorder %s54, %s55
      %p64 = scmp.eq.s32.totalorder %s23, 0
      %p65 = por %p63, %p64
      %p66 = scmp.ne.s32.totalorder %s54, %s55
      %p67 = scmp.eq.s32.totalorder %s24, 1
      %p68 = por %p66, %p67
      %p70 = scmp.ne.s32.totalorder %s55, %s69
      %p71 = scmp.eq.s32.totalorder %s24, 0
      %p72 = por %p70, %p71
      %s74 = sadd.s32 %s73, 1
      %p77 = scmp.eq.s32.totalorder %s18, 1
      %p78 = scmp.ne.s32.totalorder %s73, %s75
      %p79 = scmp.eq.s32.totalorder %s18, 0
      %p80 = por %p78, %p79
      %p81 = scmp.ne.s32.totalorder %s73, %s75
      %p82 = scmp.eq.s32.totalorder %s23, 1
      %p83 = por %p81, %p82
      %p84 = scmp.ne.s32.totalorder %s75, %s76
      %p85 = scmp.eq.s32.totalorder %s23, 0
      %p86 = por %p84, %p85
      %p87 = scmp.ne.s32.totalorder %s75, %s76
      %p88 = scmp.eq.s32.totalorder %s24, 1
      %p89 = por %p87, %p88
      %p91 = scmp.ne.s32.totalorder %s76, %s90
      %p92 = scmp.eq.s32.totalorder %s24, 0
      %p93 = por %p91, %p92
      %s95 = sadd.s32 %s94, 1
      %p98 = scmp.eq.s32.totalorder %s18, 1
      %p99 = scmp.ne.s32.totalorder %s94, %s96
      %p100 = scmp.eq.s32.totalorder %s18, 0
      %p101 = por %p99, %p100
      %p102 = scmp.ne.s32.totalorder %s94, %s96
      %p103 = scmp.eq.s32.totalorder %s23, 1
      %p104 = por %p102, %p103
      %p105 = scmp.ne.s32.totalorder %s96, %s97
      %p106 = scmp.eq.s32.totalorder %s23, 0
      %p107 = por %p105, %p106
      %p108 = scmp.ne.s32.totalorder %s96, %s97
      %p109 = scmp.eq.s32.totalorder %s24, 1
      %p110 = por %p108, %p109
      %p112 = scmp.ne.s32.totalorder %s97, %s111
      %p113 = scmp.eq.s32.totalorder %s24, 0
      %p114 = por %p112, %p113
      %s115 = ssub.s32 %s18, %s25
      %p116 = scmp.eq.s32.totalorder %s115, 0
      %s118 = sadd.s32 %s117, 1
      %s119 = scalar_select %p116, %s117, %s118
      %p122 = pneg %p116
      %p123 = scmp.eq.s32.totalorder %s18, 1
      %p124 = por %p122, %p123
      %p125 = scmp.ne.s32.totalorder %s117, %s120
      %p126 = scmp.eq.s32.totalorder %s18, 0
      %p127 = por %p125, %p126
      %p128 = scmp.ne.s32.totalorder %s117, %s120
      %p129 = scmp.eq.s32.totalorder %s23, 1
      %p130 = por %p128, %p129
      %p131 = scmp.ne.s32.totalorder %s120, %s121
      %p132 = scmp.eq.s32.totalorder %s23, 0
      %p133 = por %p131, %p132
      %p134 = scmp.ne.s32.totalorder %s120, %s121
      %p135 = scmp.eq.s32.totalorder %s24, 1
      %p136 = por %p134, %p135
      %p138 = scmp.ne.s32.totalorder %s121, %s137
      %p139 = scmp.eq.s32.totalorder %s24, 0
      %p140 = por %p138, %p139
      %p141 = scmp.le.s32.totalorder 1, %s18
      %p142 = scmp.lt.s32.totalorder %s18, 3
      %p143 = pnand %p141, %p142
      %p144 = pneg %p143
      // Predicated region
      $region9: #{tpu_custom_call.1} parent=5 // pred_check
        _
      $region10: #{tpu_custom_call.1} parent=5 // pred_check_branch
        %146 = sbr.rel (%p143) target = $region12
      $region11: #{tpu_custom_call.1} parent=5 // pred_region
        %s147 = ssub.s32 %s18, 1
        // Predicated region
        $region13: #{tpu_custom_call.1} parent=11 // pred_check
          %p148 = pneg %p65
        $region14: #{tpu_custom_call.1} parent=11 // pred_check_branch
          %150 = sbr.rel (%p148) target = $region16
        $region15: #{tpu_custom_call.1} parent=11 // pred_region
          %s152 = ssub.s32 64, 64
          %153 = vsyncadd [#allocation7], %s152
          %s155 = sshll.u32 [#allocation6], 4
          %s156 = int_to_ptr.vmem [resolvable:$true] %s155
          %158 = dma.hbm_to_vmem [thread:$0]  %s1, 64, %s156, [#allocation7]
        $region16: #{tpu_custom_call.1} parent=11 // pred_fallthru
          _
        // Predicated region
        $region17: #{tpu_custom_call.1} parent=11 // pred_check
          %p159 = pneg %p86
        $region18: #{tpu_custom_call.1} parent=11 // pred_check_branch
          %161 = sbr.rel (%p159) target = $region20
        $region19: #{tpu_custom_call.1} parent=11 // pred_region
          %s163 = ssub.s32 64, 64
          %164 = vsyncadd [#allocation7], %s163
          %s166 = sshll.u32 [#allocation8], 4
          %s167 = int_to_ptr.vmem [resolvable:$true] %s166
          %169 = dma.hbm_to_vmem [thread:$0]  %s2, 64, %s167, [#allocation7]
        $region20: #{tpu_custom_call.1} parent=11 // pred_fallthru
          _
        // Predicated region
        $region21: #{tpu_custom_call.1} parent=11 // pred_check
          %p170 = pneg %p107
        $region22: #{tpu_custom_call.1} parent=11 // pred_check_branch
          %172 = sbr.rel (%p170) target = $region24
        $region23: #{tpu_custom_call.1} parent=11 // pred_region
          %s174 = ssub.s32 256, 256
          %175 = vsyncadd [#allocation10], %s174
          %s177 = sshll.u32 [#allocation9], 4
          %s178 = int_to_ptr.vmem [resolvable:$true] %s177
          %180 = dma.hbm_to_vmem [thread:$0]  %s3, 256, %s178, [#allocation10]
        $region24: #{tpu_custom_call.1} parent=11 // pred_fallthru
          _
      $region12: #{tpu_custom_call.1} parent=5 // pred_fallthru
        _
      %p181 = scmp.lt.s32.totalorder %s18, 2
      // Predicated region
      $region25: #{tpu_custom_call.1} parent=5 // pred_check
        %p182 = pneg %p181
      $region26: #{tpu_custom_call.1} parent=5 // pred_check_branch
        %184 = sbr.rel (%p182) target = $region28
      $region27: #{tpu_custom_call.1} parent=5 // pred_region
        // Predicated region
        $region29: #{tpu_custom_call.1} parent=27 // pred_check
          %p185 = pneg %p38
        $region30: #{tpu_custom_call.1} parent=27 // pred_check_branch
          %187 = sbr.rel (%p185) target = $region32
        $region31: #{tpu_custom_call.1} parent=27 // pred_region
          %s188 = sand.u32 %s28, 1
          %s189 = scalar_lea.sflag [#allocation4], %s188
          %s190 = sand.u32 %s28, 1
          %s191 = smul.addr %s190, 8
          %s192 = scalar_lea.vmem [#allocation3], %s191
          %s193 = smul.u32 2, %s18
          %s195 = ssub.s32 128, 128
          %196 = vsyncadd %s189, %s195
          %s197 = smul.addr %s193, 64
          %s198 = scalar_lea.hbm %s0, %s197
          %s200 = sshll.u32 %s192, 4
          %s201 = int_to_ptr.vmem [resolvable:$true] %s200
          %203 = dma.hbm_to_vmem [thread:$0]  %s198, 128, %s201, %s189
        $region32: #{tpu_custom_call.1} parent=27 // pred_fallthru
          _
      $region28: #{tpu_custom_call.1} parent=5 // pred_fallthru
        _
      %p204 = scmp.le.s32.totalorder 1, %s18
      %p205 = scmp.lt.s32.totalorder %s18, 3
      %p206 = pnand %p204, %p205
      %p207 = pneg %p206
      // Predicated region
      $region33: #{tpu_custom_call.1} parent=5 // pred_check
        _
      $region34: #{tpu_custom_call.1} parent=5 // pred_check_branch
        %209 = sbr.rel (%p206) target = $region36
      $region35: #{tpu_custom_call.1} parent=5 // pred_region
        %s210 = ssub.s32 %s18, 1
        %s211 = sand.u32 %s31, 1
        %s212 = scalar_lea.sflag [#allocation4], %s211
        %s213 = sand.u32 %s31, 1
        %s214 = smul.addr %s213, 8
        %s215 = scalar_lea.vmem [#allocation3], %s214
        // Predicated region
        $region37: #{tpu_custom_call.1} parent=35 // pred_check
          %p216 = pneg %p44
        $region38: #{tpu_custom_call.1} parent=35 // pred_check_branch
          %218 = sbr.rel (%p216) target = $region40
        $region39: #{tpu_custom_call.1} parent=35 // pred_region
          %219 = dma.done %s212, 128
        $region40: #{tpu_custom_call.1} parent=35 // pred_fallthru
          _
        // Predicated region
        $region41: #{tpu_custom_call.1} parent=35 // pred_check
          %p220 = pneg %p65
        $region42: #{tpu_custom_call.1} parent=35 // pred_check_branch
          %222 = sbr.rel (%p220) target = $region44
        $region43: #{tpu_custom_call.1} parent=35 // pred_region
          %223 = dma.done [#allocation7], 64
        $region44: #{tpu_custom_call.1} parent=35 // pred_fallthru
          _
        // Predicated region
        $region45: #{tpu_custom_call.1} parent=35 // pred_check
          %p224 = pneg %p86
        $region46: #{tpu_custom_call.1} parent=35 // pred_check_branch
          %226 = sbr.rel (%p224) target = $region48
        $region47: #{tpu_custom_call.1} parent=35 // pred_region
          %227 = dma.done [#allocation7], 64
        $region48: #{tpu_custom_call.1} parent=35 // pred_fallthru
          _
        // Predicated region
        $region49: #{tpu_custom_call.1} parent=35 // pred_check
          %p228 = pneg %p107
        $region50: #{tpu_custom_call.1} parent=35 // pred_check_branch
          %230 = sbr.rel (%p228) target = $region52
        $region51: #{tpu_custom_call.1} parent=35 // pred_region
          %231 = dma.done [#allocation10], 256
        $region52: #{tpu_custom_call.1} parent=35 // pred_fallthru
          _
        %s232 = sand.u32 %s31, 1
        %s233 = scalar_lea.sflag [#allocation4], %s232
        %s234 = sand.u32 %s31, 1
        %s235 = smul.addr %s234, 8
        %s236 = scalar_lea.vmem [#allocation3], %s235
        %p237 = pneg %p44
        %p238 = pneg %p41
        %p239 = pneg %p65
        %p240 = pneg %p62
        %p241 = pneg %p86
        %p242 = pneg %p83
        %p243 = pneg %p107
        %p244 = pneg %p104
        %p245 = pneg %p133
        %p246 = pneg %p130
        %s247 = sand.u32 %s120, 1
        %s248 = scalar_lea.sflag [#allocation5], %s247
        %s249 = sand.u32 %s120, 1
        %s250 = smul.addr %s249, 8
        %s251 = scalar_lea.vmem [#allocation11], %s250
        %s252 = smul.u32 2, %s23
        %s253 = smul.u32 2, %s23
        %v254 = vld [vmem:[%s215] sm:$0xff]
        %v255 = vlaneseq
        %vm256 = vcmp.ge.s32.totalorder %v255, 0
        %vm257 = vcmp.lt.s32.totalorder %v255, 256
        %vm258 = vmand %vm256, %vm257
        %s259 = scalar_lea.vmem [#allocation2], 36
        %260 = vst.msk [vmem:[%s259] ss:$8 sm:$0x3] %vm258, 1.0
        %261 = vst.msk [vmem:[%s259] ss:$8 sm:$0x0] %vm258, 1.0
        %v263 = vcombine.high %v254, %v254
        %265 = vrot.lane.b32.xlu0 %v254, 16
        %v266 = vpop.permute.xlu0 %265
        %267 = vrot.lane.b32.xlu0 %v263, 16
        %v268 = vpop.permute.xlu0 %267
        %v269 = vlaneseq
        %v270 = vand.u32 %v269, 127
        %vm271 = vcmp.lt.s32.totalorder %v270, 16
        %v272 = vsel %vm271, %v266, %v268
        %v273 = vsel %vm271, %v268, %v266
        %274 = vrot.lane.b32.xlu0 %v273, 1
        %v275 = vpop.permute.xlu0 %274
        %276 = vrot.lane.b32.xlu0 %v272, 1
        %v277 = vpop.permute.xlu0 %276
        %vm278 = vcmp.lt.s32.totalorder %v270, 1
        %v279 = vsel %vm278, %v275, %v277
        %v280 = vsel %vm278, %v277, %v275
        %281 = vrot.lane.b32.xlu0 %v254, 15
        %v282 = vpop.permute.xlu0 %281
        %283 = vrot.lane.b32.xlu0 %v263, 15
        %v284 = vpop.permute.xlu0 %283
        %vm285 = vcmp.lt.s32.totalorder %v270, 15
        %v286 = vsel %vm285, %v282, %v284
        %v287 = vsel %vm285, %v284, %v282
        %288 = vrot.lane.b32.xlu0 %v254, 1
        %v289 = vpop.permute.xlu0 %288
        %290 = vrot.lane.b32.xlu0 %v263, 1
        %v291 = vpop.permute.xlu0 %290
        %v292 = vsel %vm278, %v289, %v291
        %v293 = vsel %vm278, %v291, %v289
        %v294 = vld [vmem:[#allocation9] ss:$8 sm:$0x3]
        %v296 = vlaneseq
        %v297 = vshrl.u32 %v296, 7
        %v298 = vsub.s32 0, %v297
        %v299 = vrot.slane %v294, %v298
        %v300 = vlaneseq
        %v301 = vshrl.u32 %v300, 7
        %v302 = vsub.s32 1, %v301
        %v303 = vrot.slane %v294, %v302
        %v306 = vmul.f32 %v280, %v299
        %v307 = vmul.f32 %v279, %v303
        %308 = vst [vmem:[#allocation2] sm:$0xf] %v306
        %309 = vst [vmem:[#allocation2 + $0x8] sm:$0xf] %v307
        %s310 = scalar_lea.vmem [#allocation9], 1
        %v311 = vld [vmem:[%s310] ss:$8 sm:$0x3]
        %v313 = vlaneseq
        %v314 = vshrl.u32 %v313, 7
        %v315 = vsub.s32 0, %v314
        %v316 = vrot.slane %v311, %v315
        %v317 = vlaneseq
        %v318 = vshrl.u32 %v317, 7
        %v319 = vsub.s32 1, %v318
        %v320 = vrot.slane %v311, %v319
        %v323 = vmul.f32 %v273, %v316
        %v324 = vmul.f32 %v272, %v320
        %v327 = vrot.slane %v323, 4
        %v328 = vrot.slane %v324, 4
        %331 = vst [vmem:[#allocation2] sm:$0xf0] %v327
        %332 = vst [vmem:[#allocation2 + $0x8] sm:$0xf0] %v328
        %s333 = scalar_lea.vmem [#allocation9], 2
        %v334 = vld [vmem:[%s333] ss:$8 sm:$0x3]
        %v336 = vlaneseq
        %v337 = vshrl.u32 %v336, 7
        %v338 = vsub.s32 0, %v337
        %v339 = vrot.slane %v334, %v338
        %v340 = vlaneseq
        %v341 = vshrl.u32 %v340, 7
        %v342 = vsub.s32 1, %v341
        %v343 = vrot.slane %v334, %v342
        %v346 = vmul.f32 %v287, %v339
        %v347 = vmul.f32 %v286, %v343
        %348 = vst [vmem:[#allocation2 + $0x10] sm:$0xf] %v346
        %349 = vst [vmem:[#allocation2 + $0x18] sm:$0xf] %v347
        %s350 = scalar_lea.vmem [#allocation9], 3
        %v351 = vld [vmem:[%s350] ss:$8 sm:$0x3]
        %v353 = vlaneseq
        %v354 = vshrl.u32 %v353, 7
        %v355 = vsub.s32 0, %v354
        %v356 = vrot.slane %v351, %v355
        %v357 = vlaneseq
        %v358 = vshrl.u32 %v357, 7
        %v359 = vsub.s32 1, %v358
        %v360 = vrot.slane %v351, %v359
        %v363 = vmul.f32 %v293, %v356
        %v364 = vmul.f32 %v292, %v360
        %v367 = vrot.slane %v363, 4
        %v368 = vrot.slane %v364, 4
        %371 = vst [vmem:[#allocation2 + $0x10] sm:$0xf0] %v367
        %372 = vst [vmem:[#allocation2 + $0x18] sm:$0xf0] %v368
        %373 = vst [vmem:[#allocation2 + $0x20] sm:$0xf] %v254
        %374 = vst [vmem:[#allocation2 + $0x28] sm:$0xf] %v263
        %v375 = vld [vmem:[#allocation6] sm:$0xf]
        %v376 = vld [vmem:[#allocation2] sm:$0xff]
        %v377 = vld [vmem:[#allocation2 + $0x8] sm:$0xff]
        %v378 = vld [vmem:[#allocation2 + $0x10] sm:$0xff]
        %v379 = vld [vmem:[#allocation2 + $0x18] sm:$0xff]
        %v380 = vld [vmem:[#allocation2 + $0x20] sm:$0x1f]
        %v381 = vld [vmem:[#allocation2 + $0x28] sm:$0x1f]
        %vm382 = vcmask 171008
        %v384 = vsel %vm382, %v375, 0
        %vm386 = vcmask 1044480
        %v388 = vsel %vm386, %v380, 0
        %v391 = vsel %vm386, %v381, 0
        %393 = vmatprep.subr.mxu0 0.0
        %394 = vmatpush1.msra.mxu0 0.0
        %395 = vmatprep.subr.mxu0 0.0
        %396 = vmatpush1.msra.mxu0 0.0
        %397 = vmatprep.subr.mxu0 0.0
        %398 = vmatpush1.msra.mxu0 0.0
        %399 = vmatprep.subr.mxu0 0.0
        %400 = vmatpush1.msra.mxu0 0.0
        %401 = vmatprep.subr.mxu0 0.0
        %402 = vmatpush1.msra.mxu0 0.0
        %403 = vmatprep.subr.mxu0 0.0
        %404 = vmatpush1.msra.mxu0 0.0
        %405 = vmatprep.subr.mxu0 0.0
        %406 = vmatpush1.msra.mxu0 0.0
        %407 = vmatprep.subr.mxu0 0.0
        %408 = vmatpush1.msra.mxu0 0.0
        %409 = vmatprep.subr.mxu0 0.0
        %410 = vmatpush1.msra.mxu0 0.0
        %411 = vmatprep.subr.mxu0 0.0
        %412 = vmatpush1.msra.mxu0 0.0
        %413 = vmatprep.subr.mxu0 0.0
        %414 = vmatpush1.msra.mxu0 0.0
        %415 = vmatprep.subr.mxu0 0.0
        %416 = vmatpush1.msra.mxu0 0.0
        %417 = vmatprep.subr.mxu0 0.0
        %418 = vmatpush1.msra.mxu0 0.0
        %419 = vmatprep.subr.mxu0 %v391
        %420 = vmatpush1.msra.mxu0 %v388
        %421 = vmatprep.subr.mxu0 %v379
        %422 = vmatpush1.msra.mxu0 %v378
        %423 = vmatprep.subr.mxu0 %v377
        %424 = vmatpush1.msra.mxu0 %v376
        %425 = vmatprep.subr.mxu0 0.0
        %426 = vmatpush2.msra.mxu0 0.0
        %427 = vmatprep.subr.mxu0 0.0
        %428 = vmatpush2.msra.mxu0 0.0
        %429 = vmatprep.subr.mxu0 0.0
        %430 = vmatpush2.msra.mxu0 0.0
        %431 = vmatprep.subr.mxu0 0.0
        %432 = vmatpush2.msra.mxu0 0.0
        %433 = vmatprep.subr.mxu0 0.0
        %434 = vmatpush2.msra.mxu0 0.0
        %435 = vmatprep.subr.mxu0 0.0
        %436 = vmatpush2.msra.mxu0 0.0
        %437 = vmatprep.subr.mxu0 0.0
        %438 = vmatpush2.msra.mxu0 0.0
        %439 = vmatprep.subr.mxu0 0.0
        %440 = vmatpush2.msra.mxu0 0.0
        %441 = vmatprep.subr.mxu0 0.0
        %442 = vmatpush2.msra.mxu0 0.0
        %443 = vmatprep.subr.mxu0 0.0
        %444 = vmatpush2.msra.mxu0 0.0
        %445 = vmatprep.subr.mxu0 0.0
        %446 = vmatpush2.msra.mxu0 0.0
        %447 = vmatprep.subr.mxu0 0.0
        %448 = vmatpush2.msra.mxu0 0.0
        %449 = vmatprep.subr.mxu0 0.0
        %450 = vmatpush2.msra.mxu0 0.0
        %451 = vmatprep.subr.mxu0 0.0
        %452 = vmatpush2.msra.mxu0 0.0
        %453 = vmatprep.subr.mxu0 0.0
        %454 = vmatpush2.msra.mxu0 0.0
        %455 = vmatprep.subr.mxu0 0.0
        %456 = vmatpush2.msra.mxu0 0.0
        %457 = vmatprep.mubr.f32.mxu0 0.0
        %458 = vmatmul.mubr.f32.gmra.mxu0 %v384
        %v459 = vpop.f32.mrf.mxu0
        %v460 = vadd.f32 0.0, %v459
        %v461 = vpop.f32.mrf.mxu0
        %v462 = vadd.f32 0.0, %v461
        %463 = vdwg.mxu0
        %v464 = vmax.f32 %v460, 0.0
        %v465 = vmax.f32 %v462, 0.0
        %466 = vrot.lane.b32.xlu0 %v464, 16
        %v467 = vpop.permute.xlu0 %466
        %468 = vrot.lane.b32.xlu0 %v465, 16
        %v469 = vpop.permute.xlu0 %468
        %v470 = vsel %vm271, %v467, %v469
        %v471 = vsel %vm271, %v469, %v467
        %472 = vrot.lane.b32.xlu0 %v471, 1
        %v473 = vpop.permute.xlu0 %472
        %474 = vrot.lane.b32.xlu0 %v470, 1
        %v475 = vpop.permute.xlu0 %474
        %v476 = vsel %vm278, %v473, %v475
        %v477 = vsel %vm278, %v475, %v473
        %478 = vrot.lane.b32.xlu0 %v464, 15
        %v479 = vpop.permute.xlu0 %478
        %480 = vrot.lane.b32.xlu0 %v465, 15
        %v481 = vpop.permute.xlu0 %480
        %v482 = vsel %vm285, %v479, %v481
        %v483 = vsel %vm285, %v481, %v479
        %484 = vrot.lane.b32.xlu0 %v464, 1
        %v485 = vpop.permute.xlu0 %484
        %486 = vrot.lane.b32.xlu0 %v465, 1
        %v487 = vpop.permute.xlu0 %486
        %v488 = vsel %vm278, %v485, %v487
        %v489 = vsel %vm278, %v487, %v485
        %v490 = vld [vmem:[#allocation9] ss:$8 sm:$0x3]
        %v492 = vlaneseq
        %v493 = vshrl.u32 %v492, 7
        %v494 = vsub.s32 0, %v493
        %v495 = vrot.slane %v490, %v494
        %v496 = vlaneseq
        %v497 = vshrl.u32 %v496, 7
        %v498 = vsub.s32 1, %v497
        %v499 = vrot.slane %v490, %v498
        %v502 = vmul.f32 %v477, %v495
        %v503 = vmul.f32 %v476, %v499
        %504 = vst [vmem:[#allocation2] sm:$0xf] %v502
        %505 = vst [vmem:[#allocation2 + $0x8] sm:$0xf] %v503
        %v506 = vld [vmem:[%s310] ss:$8 sm:$0x3]
        %v508 = vlaneseq
        %v509 = vshrl.u32 %v508, 7
        %v510 = vsub.s32 0, %v509
        %v511 = vrot.slane %v506, %v510
        %v512 = vlaneseq
        %v513 = vshrl.u32 %v512, 7
        %v514 = vsub.s32 1, %v513
        %v515 = vrot.slane %v506, %v514
        %v518 = vmul.f32 %v471, %v511
        %v519 = vmul.f32 %v470, %v515
        %v522 = vrot.slane %v518, 4
        %v523 = vrot.slane %v519, 4
        %526 = vst [vmem:[#allocation2] sm:$0xf0] %v522
        %527 = vst [vmem:[#allocation2 + $0x8] sm:$0xf0] %v523
        %v528 = vld [vmem:[%s333] ss:$8 sm:$0x3]
        %v530 = vlaneseq
        %v531 = vshrl.u32 %v530, 7
        %v532 = vsub.s32 0, %v531
        %v533 = vrot.slane %v528, %v532
        %v534 = vlaneseq
        %v535 = vshrl.u32 %v534, 7
        %v536 = vsub.s32 1, %v535
        %v537 = vrot.slane %v528, %v536
        %v540 = vmul.f32 %v483, %v533
        %v541 = vmul.f32 %v482, %v537
        %542 = vst [vmem:[#allocation2 + $0x10] sm:$0xf] %v540
        %543 = vst [vmem:[#allocation2 + $0x18] sm:$0xf] %v541
        %v544 = vld [vmem:[%s350] ss:$8 sm:$0x3]
        %v546 = vlaneseq
        %v547 = vshrl.u32 %v546, 7
        %v548 = vsub.s32 0, %v547
        %v549 = vrot.slane %v544, %v548
        %v550 = vlaneseq
        %v551 = vshrl.u32 %v550, 7
        %v552 = vsub.s32 1, %v551
        %v553 = vrot.slane %v544, %v552
        %v556 = vmul.f32 %v489, %v549
        %v557 = vmul.f32 %v488, %v553
        %v560 = vrot.slane %v556, 4
        %v561 = vrot.slane %v557, 4
        %564 = vst [vmem:[#allocation2 + $0x10] sm:$0xf0] %v560
        %565 = vst [vmem:[#allocation2 + $0x18] sm:$0xf0] %v561
        %566 = vst [vmem:[#allocation2 + $0x20] sm:$0xf] %v464
        %567 = vst [vmem:[#allocation2 + $0x28] sm:$0xf] %v465
        %v568 = vld [vmem:[#allocation8] sm:$0xf]
        %v569 = vld [vmem:[#allocation2] sm:$0xff]
        %v570 = vld [vmem:[#allocation2 + $0x8] sm:$0xff]
        %v571 = vld [vmem:[#allocation2 + $0x10] sm:$0xff]
        %v572 = vld [vmem:[#allocation2 + $0x18] sm:$0xff]
        %v573 = vld [vmem:[#allocation2 + $0x20] sm:$0x1f]
        %v574 = vld [vmem:[#allocation2 + $0x28] sm:$0x1f]
        %v576 = vsel %vm382, %v568, 0
        %v579 = vsel %vm386, %v573, 0
        %v582 = vsel %vm386, %v574, 0
        %584 = vmatprep.subr.mxu0 0.0
        %585 = vmatpush1.msra.mxu0 0.0
        %586 = vmatprep.subr.mxu0 0.0
        %587 = vmatpush1.msra.mxu0 0.0
        %588 = vmatprep.subr.mxu0 0.0
        %589 = vmatpush1.msra.mxu0 0.0
        %590 = vmatprep.subr.mxu0 0.0
        %591 = vmatpush1.msra.mxu0 0.0
        %592 = vmatprep.subr.mxu0 0.0
        %593 = vmatpush1.msra.mxu0 0.0
        %594 = vmatprep.subr.mxu0 0.0
        %595 = vmatpush1.msra.mxu0 0.0
        %596 = vmatprep.subr.mxu0 0.0
        %597 = vmatpush1.msra.mxu0 0.0
        %598 = vmatprep.subr.mxu0 0.0
        %599 = vmatpush1.msra.mxu0 0.0
        %600 = vmatprep.subr.mxu0 0.0
        %601 = vmatpush1.msra.mxu0 0.0
        %602 = vmatprep.subr.mxu0 0.0
        %603 = vmatpush1.msra.mxu0 0.0
        %604 = vmatprep.subr.mxu0 0.0
        %605 = vmatpush1.msra.mxu0 0.0
        %606 = vmatprep.subr.mxu0 0.0
        %607 = vmatpush1.msra.mxu0 0.0
        %608 = vmatprep.subr.mxu0 0.0
        %609 = vmatpush1.msra.mxu0 0.0
        %610 = vmatprep.subr.mxu0 %v582
        %611 = vmatpush1.msra.mxu0 %v579
        %612 = vmatprep.subr.mxu0 %v572
        %613 = vmatpush1.msra.mxu0 %v571
        %614 = vmatprep.subr.mxu0 %v570
        %615 = vmatpush1.msra.mxu0 %v569
        %616 = vmatprep.subr.mxu0 0.0
        %617 = vmatpush2.msra.mxu0 0.0
        %618 = vmatprep.subr.mxu0 0.0
        %619 = vmatpush2.msra.mxu0 0.0
        %620 = vmatprep.subr.mxu0 0.0
        %621 = vmatpush2.msra.mxu0 0.0
        %622 = vmatprep.subr.mxu0 0.0
        %623 = vmatpush2.msra.mxu0 0.0
        %624 = vmatprep.subr.mxu0 0.0
        %625 = vmatpush2.msra.mxu0 0.0
        %626 = vmatprep.subr.mxu0 0.0
        %627 = vmatpush2.msra.mxu0 0.0
        %628 = vmatprep.subr.mxu0 0.0
        %629 = vmatpush2.msra.mxu0 0.0
        %630 = vmatprep.subr.mxu0 0.0
        %631 = vmatpush2.msra.mxu0 0.0
        %632 = vmatprep.subr.mxu0 0.0
        %633 = vmatpush2.msra.mxu0 0.0
        %634 = vmatprep.subr.mxu0 0.0
        %635 = vmatpush2.msra.mxu0 0.0
        %636 = vmatprep.subr.mxu0 0.0
        %637 = vmatpush2.msra.mxu0 0.0
        %638 = vmatprep.subr.mxu0 0.0
        %639 = vmatpush2.msra.mxu0 0.0
        %640 = vmatprep.subr.mxu0 0.0
        %641 = vmatpush2.msra.mxu0 0.0
        %642 = vmatprep.subr.mxu0 0.0
        %643 = vmatpush2.msra.mxu0 0.0
        %644 = vmatprep.subr.mxu0 0.0
        %645 = vmatpush2.msra.mxu0 0.0
        %646 = vmatprep.subr.mxu0 0.0
        %647 = vmatpush2.msra.mxu0 0.0
        %648 = vmatprep.mubr.f32.mxu0 0.0
        %649 = vmatmul.mubr.f32.gmra.mxu0 %v576
        %v650 = vpop.f32.mrf.mxu0
        %v651 = vadd.f32 0.0, %v650
        %v652 = vpop.f32.mrf.mxu0
        %v653 = vadd.f32 0.0, %v652
        %654 = vdwg.mxu0
        %v657 = vcombine.low %v651, %v653
        %v659 = vadd.f32 %v254, %v657
        %660 = vst [vmem:[%s251] sm:$0xff] %v659
        %s661 = sand.u32 %s120, 1
        %s662 = scalar_lea.sflag [#allocation5], %s661
        %s663 = sand.u32 %s120, 1
        %s664 = smul.addr %s663, 8
        %s665 = scalar_lea.vmem [#allocation11], %s664
        // Predicated region
        $region53: #{tpu_custom_call.1} parent=35 // pred_check
          %p666 = pneg %p130
        $region54: #{tpu_custom_call.1} parent=35 // pred_check_branch
          %668 = sbr.rel (%p666) target = $region56
        $region55: #{tpu_custom_call.1} parent=35 // pred_region
          %s669 = smul.u32 2, %s23
          %s671 = ssub.s32 128, 128
          %672 = vsyncadd %s662, %s671
          %s673 = smul.addr %s669, 64
          %s674 = scalar_lea.hbm %s4, %s673
          %s676 = sshll.u32 %s665, 4
          %s677 = int_to_ptr.vmem [resolvable:$true] %s676
          %679 = dma.vmem_to_hbm [thread:$0]  %s677, 128, %s674, %s662
        $region56: #{tpu_custom_call.1} parent=35 // pred_fallthru
          _
      $region36: #{tpu_custom_call.1} parent=5 // pred_fallthru
        _
      %p680 = scmp.le.s32.totalorder 2, %s18
      // Predicated region
      $region57: #{tpu_custom_call.1} parent=5 // pred_check
        %p681 = pneg %p680
      $region58: #{tpu_custom_call.1} parent=5 // pred_check_branch
        %683 = sbr.rel (%p681) target = $region60
      $region59: #{tpu_custom_call.1} parent=5 // pred_region
        %s684 = ssub.s32 %s18, 2
        // Predicated region
        $region61: #{tpu_custom_call.1} parent=59 // pred_check
          %p685 = pneg %p136
        $region62: #{tpu_custom_call.1} parent=59 // pred_check_branch
          %687 = sbr.rel (%p685) target = $region64
        $region63: #{tpu_custom_call.1} parent=59 // pred_region
          %s688 = sand.u32 %s121, 1
          %s689 = scalar_lea.sflag [#allocation5], %s688
          %s690 = sand.u32 %s121, 1
          %s691 = smul.addr %s690, 8
          %s692 = scalar_lea.vmem [#allocation11], %s691
          %693 = dma.done %s689, 128
        $region64: #{tpu_custom_call.1} parent=59 // pred_fallthru
          _
      $region60: #{tpu_custom_call.1} parent=5 // pred_fallthru
        _
    $region6: #{tpu_custom_call.1} parent=1 // loop_footer
      %s22 = sadd.s32 1, %s18
    $region7: #{tpu_custom_call.1} parent=1 // loop_footer_branch
      %17 = sbr.rel target = $region3
    $region8: #{tpu_custom_call.1} parent=1 // loop_exit
      _
    %694 = vsyncpa [#allocation4], 1
    %s695 = scalar_lea.sflag [#allocation4], 1
    %696 = vsyncpa %s695, 1
    %697 = vsyncpa [#allocation7], 1
    %698 = vsyncpa [#allocation10], 1
    %699 = vsyncpa [#allocation5], 1
    %s700 = scalar_lea.sflag [#allocation5], 1
    %701 = vsyncpa %s700, 1

</llo_original>
